<compile_context>
chip_gen: v7x
topology: tpu7x:2x2x1
jax: 0.10.0
libtpu: 0.0.40
codegen_flags: <defaults>
</compile_context>

<pallas_src>
from types import SimpleNamespace

import jax
import jax.numpy as jnp
from jax.experimental import pallas as pl
from jax.experimental.pallas import tpu as pltpu


def _vmem_plan():
    """Return (vmem_limit_bytes, per-step byte budget) for the local generation."""
    cap = 64 * 1024 * 1024                        # assume smallest (v7x: 64 MiB/TC)
    try:
        cap = int(getattr(pltpu.get_tpu_info(), "vmem_capacity_bytes", cap))
    except Exception:
        pass
    limit = min(cap // 2, 48 * 1024 * 1024)       # explicit scoped-VMEM ceiling
    budget = limit // 2                           # headroom for compiler scratch/out
    return limit, budget


def _choose_tile_rows(n_rows, lane_width, itemsize, budget):
    """Rows per grid step: sized by bytes (2 inputs x 2 pipeline buffers in the
    input dtype + ~6 full-tile f32 temporaries), capped so the grid keeps >=2-4
    steps whenever the row count allows it, and sublane/packing aligned."""
    bytes_per_row = 2 * 2 * lane_width * itemsize + 6 * lane_width * 4
    tr = budget // bytes_per_row
    align = 8 * max(1, 4 // max(itemsize, 1))     # 8 (f32) / 16 (bf16) / 32 (int8)
    if n_rows >= 4 * align:
        tr = min(tr, pl.cdiv(n_rows, 4))          # >= 4 grid steps
    elif n_rows >= 2 * align:
        tr = min(tr, pl.cdiv(n_rows, 2))          # >= 2 grid steps
    tr = max(align, (int(tr) // align) * align)
    return n_rows if tr >= n_rows else tr


# --------------------------------------------------------------------------
# Lane-packed kernel: 128 // L logical rows per vreg row (typical KD, L=16).
# --------------------------------------------------------------------------
def _make_packed_kernel(temperature, list_len, batch, tile_rows):
    inv_t = 1.0 / float(temperature)
    segs = 128 // list_len

    def kernel(t_ref, s_ref, m_ref, o_ref):
        i = pl.program_id(0)
        t = t_ref[...].astype(jnp.float32) * inv_t        # (TR, 128)
        s = s_ref[...].astype(jnp.float32) * inv_t
        m = m_ref[...]                                    # (128, segs) segment-sum ones

        # A packed-row max is still a constant per logical row, so the softmax
        # identities stay exact (only risk is exp underflow if scores inside a
        # packed row span > ~88 after /T, which KD score ranges never do).
        t_c = jnp.max(t, axis=-1, keepdims=True)
        s_c = jnp.max(s, axis=-1, keepdims=True)
        t_exp = jnp.exp(t - t_c)
        s_shift = s - s_c
        s_exp = jnp.exp(s_shift)

        # Segmented (per logical row) sums on the otherwise-idle MXU.
        den_t = jnp.dot(t_exp, m, preferred_element_type=jnp.float32)           # (TR,segs)
        den_s = jnp.dot(s_exp, m, preferred_element_type=jnp.float32)           # (TR,segs)
        num = jnp.dot(t_exp * s_shift, m, preferred_element_type=jnp.float32)   # (TR,segs)

        # sum(p_t) == 1  ->  loss_row = logsumexp(s) - E_{p_t}[s]; exact divide.
        seg_loss = jnp.log(den_s) - num / den_t

        # Mask logical rows past the true batch (wrapper zero-pad + any ragged
        # last tile). All reductions above are row-local, so garbage in padded
        # rows cannot contaminate valid rows.
        row = jax.lax.broadcasted_iota(jnp.int32, (tile_rows, segs), 0)
        seg = jax.lax.broadcasted_iota(jnp.int32, (tile_rows, segs), 1)
        valid = ((i * tile_rows + row) * segs + seg) < batch
        seg_loss = jnp.where(valid, seg_loss, 0.0)

        tile_sum = jnp.sum(seg_loss, axis=1, keepdims=True)   # (TR, 1)
        tile_sum = jnp.sum(tile_sum, axis=0, keepdims=True)   # (1, 1)
        o_ref[...] = jnp.broadcast_to(tile_sum, (8, 128))

    return kernel


# --------------------------------------------------------------------------
# General fallback: one logical row per sublane row (any list length L).
# --------------------------------------------------------------------------
def _make_row_kernel(temperature, batch, tile_rows):
    inv_t = 1.0 / float(temperature)

    def kernel(t_ref, s_ref, o_ref):
        i = pl.program_id(0)
        t = t_ref[...].astype(jnp.float32) * inv_t        # (TR, L)
        s = s_ref[...].astype(jnp.float32) * inv_t

        t_c = jnp.max(t, axis=-1, keepdims=True)
        t_exp = jnp.exp(t - t_c)
        t_den = jnp.sum(t_exp, axis=-1, keepdims=True)

        s_c = jnp.max(s, axis=-1, keepdims=True)
        s_shift = s - s_c
        lse = jnp.log(jnp.sum(jnp.exp(s_shift), axis=-1, keepdims=True))

        # loss_row = logsumexp(s) - E_{p_t}[s]   (sum(p_t) == 1, exact divide)
        num = jnp.sum(t_exp * s_shift, axis=-1, keepdims=True)
        per_row = lse - num / t_den                       # (TR, 1)

        # Only the per-row mask is needed: reductions are row-local, so garbage
        # in Pallas-padded rows of a ragged last tile is simply zeroed here.
        row = jax.lax.broadcasted_iota(jnp.int32, (tile_rows, 1), 0)
        valid = (i * tile_rows + row) < batch
        per_row = jnp.where(valid, per_row, 0.0)

        tile_sum = jnp.sum(per_row, axis=0, keepdims=True)
        o_ref[...] = jnp.broadcast_to(tile_sum, (8, 128))

    return kernel


class ListwiseLossPallas:
    """JAX/Pallas port of ListwiseLoss(args) with list_loss='listnet' and a
    deterministic (pass-through) negative sampler."""

    def __init__(self, args):
        assert args.list_loss == "listnet", "only ListNet implemented here"
        # TODO(synk): 'random'/'exp'/'zipfs' negative samplers rely on
        # torch.randperm / torch.multinomial; only the deterministic
        # pass-through actor is implemented. The assert also guards the
        # permutation-invariance shortcut used below.
        assert args.neg_sampler not in ("random", "exp", "zipfs")
        self.n_pos = args.n_pos
        self.n_neg = args.n_neg
        self.temperature = float(args.temperature)

    def __call__(self, t_score, s_score):
        assert t_score.shape == s_score.shape and t_score.ndim == 2
        B, L = t_score.shape
        itemsize = max(jnp.dtype(t_score.dtype).itemsize,
                       jnp.dtype(s_score.dtype).itemsize)
        vmem_limit, budget = _vmem_plan()
        params = pltpu.CompilerParams(dimension_semantics=("parallel",),
                                      vmem_limit_bytes=vmem_limit)
        if L <= 128 and 128 % L == 0:
            return self._packed(t_score, s_score, B, L, itemsize, budget, params)
        return self._rows(t_score, s_score, B, L, itemsize, budget, params)

    # --- lane-packed path ---------------------------------------------------
    def _packed(self, t_score, s_score, B, L, itemsize, budget, params):
        segs = 128 // L
        pack = segs * 8                    # full (8,128) f32 vreg tile of logical rows
        b_pad = pl.cdiv(B, pack) * pack
        if b_pad != B:
            t_score = jnp.pad(t_score, ((0, b_pad - B), (0, 0)))
            s_score = jnp.pad(s_score, ((0, b_pad - B), (0, 0)))
        rows = b_pad // segs
        t_p = t_score.reshape(rows, 128)   # row-major contiguous -> free reshape
        s_p = s_score.reshape(rows, 128)
        # (128, segs) "block-diagonal" ones matrix: lane j belongs to segment j // L.
        seg_mat = (jax.lax.broadcasted_iota(jnp.int32, (128, segs), 0) // L ==
                   jax.lax.broadcasted_iota(jnp.int32, (128, segs), 1)
                   ).astype(jnp.float32)

        tr = _choose_tile_rows(rows, 128, itemsize, budget)
        n_tiles = pl.cdiv(rows, tr)
        partial = pl.pallas_call(
            _make_packed_kernel(self.temperature, L, B, tr),
            out_shape=jax.ShapeDtypeStruct((n_tiles * 8, 128), jnp.float32),
            grid=(n_tiles,),
            in_specs=[
                pl.BlockSpec((tr, 128), lambda i: (i, 0)),
                pl.BlockSpec((tr, 128), lambda i: (i, 0)),
                pl.BlockSpec((128, segs), lambda i: (0, 0)),  # resident constant
            ],
            out_specs=pl.BlockSpec((8, 128), lambda i: (i, 0)),
            compiler_params=params,
        )(t_p, s_p, seg_mat)
        # Every element of a tile's (8,128) output block holds that tile's sum.
        return jnp.sum(partial) / (8.0 * 128.0 * B)

    # --- general fallback ----------------------------------------------------
    def _rows(self, t_score, s_score, B, L, itemsize, budget, params):
        lane_w = pl.cdiv(L, 128) * 128     # VMEM lane padding for the byte budget
        tb = _choose_tile_rows(B, lane_w, itemsize, budget)
        n_tiles = pl.cdiv(B, tb)
        partial = pl.pallas_call(
            _make_row_kernel(self.temperature, B, tb),
            out_shape=jax.ShapeDtypeStruct((n_tiles * 8, 128), jnp.float32),
            grid=(n_tiles,),
            in_specs=[
                pl.BlockSpec((tb, L), lambda i: (i, 0)),
                pl.BlockSpec((tb, L), lambda i: (i, 0)),
            ],
            out_specs=pl.BlockSpec((8, 128), lambda i: (i, 0)),
            compiler_params=params,
        )(t_score, s_score)
        return jnp.sum(partial) / (8.0 * 128.0 * B)


def _reference_loss(t_score, s_score, temperature):
    # Pure-JAX mirror of the PyTorch forward (keeps the original argsort +
    # gather path to validate the permutation-invariance shortcut).
    select = jnp.argsort(-t_score, axis=1)
    t = jnp.take_along_axis(t_score, select, axis=1).astype(jnp.float32)
    s = jnp.take_along_axis(s_score, select, axis=1).astype(jnp.float32)
    p_t = jax.nn.softmax(t / temperature, axis=1)
    log_p_s = jax.nn.log_softmax(s / temperature, axis=1)
    return jnp.mean(-jnp.sum(p_t * log_p_s, axis=1))


if __name__ == "__main__":
    args = SimpleNamespace(
        n_pos=4,
        n_neg=12,
        neg_sampler="none",      # deterministic pass-through sampler
        list_loss="listnet",
        temperature=2.0,
    )
    loss_mod = ListwiseLossPallas(args)
    key = jax.random.PRNGKey(0)

    # (2, 16):  primary small case (lane-packed path, n_pos + n_neg = 16 items)
    # (37, 16): lane-packed path exercising wrapper batch padding / masking
    # (50, 96): general row-per-sublane path with a ragged last tile
    for batch, n_items in [(2, 16), (37, 16), (50, 96)]:
        key, k_t, k_s = jax.random.split(key, 3)
        t_score = jax.random.normal(k_t, (batch, n_items), dtype=jnp.float32)
        s_score = jax.random.normal(k_s, (batch, n_items), dtype=jnp.float32)

        loss = jax.block_until_ready(loss_mod(t_score, s_score))
        ref = jax.block_until_ready(
            _reference_loss(t_score, s_score, args.temperature))
        assert jnp.allclose(loss, ref, atol=1e-4, rtol=1e-4), (batch, n_items, loss, ref)

    print("KERNEL_OK")
</pallas_src>

<mosaic_0001>
module attributes {stable_mosaic.version = 11 : i64} {
  func.func @kernel(%arg0: i32, %arg1: memref<8x128xf32, #tpu.memory_space<vmem>>, %arg2: memref<8x128xf32, #tpu.memory_space<vmem>>, %arg3: memref<128x8xf32, #tpu.memory_space<vmem>>, %arg4: memref<8x128xf32, #tpu.memory_space<vmem>>) attributes {dimension_semantics = [#tpu.dimension_semantics<parallel>], iteration_bounds = array<i64: 1>, scalar_prefetch = 0 : i64, scratch_operands = 0 : i64, tpu.core_type = #tpu.core_type<tc>, window_params = [{transform_indices = @transform_0, window_bounds = array<i64: 8, 128>}, {transform_indices = @transform_1, window_bounds = array<i64: 8, 128>}, {pipeline_mode = #tpu.pipeline_mode<synchronous>, transform_indices = @transform_2, window_bounds = array<i64: 128, 8>}, {transform_indices = @transform_3, window_bounds = array<i64: 8, 128>}]} {
    %c0 = arith.constant 0 : index
    %c0_0 = arith.constant 0 : index
    %0 = vector.load %arg1[%c0, %c0_0] : memref<8x128xf32, #tpu.memory_space<vmem>>, vector<8x128xf32>
    %cst = arith.constant 5.000000e-01 : f32
    %1 = vector.broadcast %cst : f32 to vector<8x128xf32>
    %2 = arith.mulf %0, %1 : vector<8x128xf32>
    %c0_1 = arith.constant 0 : index
    %c0_2 = arith.constant 0 : index
    %3 = vector.load %arg2[%c0_1, %c0_2] : memref<8x128xf32, #tpu.memory_space<vmem>>, vector<8x128xf32>
    %cst_3 = arith.constant 5.000000e-01 : f32
    %4 = vector.broadcast %cst_3 : f32 to vector<8x128xf32>
    %5 = arith.mulf %3, %4 : vector<8x128xf32>
    %c0_4 = arith.constant 0 : index
    %c0_5 = arith.constant 0 : index
    %6 = vector.load %arg3[%c0_4, %c0_5] : memref<128x8xf32, #tpu.memory_space<vmem>>, vector<128x8xf32>
    %cst_6 = arith.constant dense<0xFF800000> : vector<8xf32>
    %7 = vector.multi_reduction <maximumf>, %2, %cst_6 [1] : vector<8x128xf32> to vector<8xf32>
    %8 = vector.shape_cast %7 : vector<8xf32> to vector<8x1xf32>
    %cst_7 = arith.constant dense<0xFF800000> : vector<8xf32>
    %9 = vector.multi_reduction <maximumf>, %5, %cst_7 [1] : vector<8x128xf32> to vector<8xf32>
    %10 = vector.shape_cast %9 : vector<8xf32> to vector<8x1xf32>
    %11 = vector.broadcast %8 : vector<8x1xf32> to vector<8x128xf32>
    %12 = arith.subf %2, %11 : vector<8x128xf32>
    %13 = math.exp %12 : vector<8x128xf32>
    %14 = vector.broadcast %10 : vector<8x1xf32> to vector<8x128xf32>
    %15 = arith.subf %5, %14 : vector<8x128xf32>
    %16 = math.exp %15 : vector<8x128xf32>
    %cst_8 = arith.constant dense<0.000000e+00> : vector<8x8xf32>
    %17 = tpu.matmul %13, %6, %cst_8 {dimension_numbers = #tpu.dot_dimension_numbers<[1], [0], [0], [1], [0, 0, 1, 1], [], []>} : vector<8x128xf32>, vector<128x8xf32>, vector<8x8xf32> -> vector<8x8xf32>
    %cst_9 = arith.constant dense<0.000000e+00> : vector<8x8xf32>
    %18 = tpu.matmul %16, %6, %cst_9 {dimension_numbers = #tpu.dot_dimension_numbers<[1], [0], [0], [1], [0, 0, 1, 1], [], []>} : vector<8x128xf32>, vector<128x8xf32>, vector<8x8xf32> -> vector<8x8xf32>
    %19 = arith.mulf %13, %15 : vector<8x128xf32>
    %cst_10 = arith.constant dense<0.000000e+00> : vector<8x8xf32>
    %20 = tpu.matmul %19, %6, %cst_10 {dimension_numbers = #tpu.dot_dimension_numbers<[1], [0], [0], [1], [0, 0, 1, 1], [], []>} : vector<8x128xf32>, vector<128x8xf32>, vector<8x8xf32> -> vector<8x8xf32>
    %21 = math.log %18 : vector<8x8xf32>
    %22 = arith.divf %20, %17 : vector<8x8xf32>
    %23 = arith.subf %21, %22 : vector<8x8xf32>
    %24 = tpu.iota {dimensions = array<i32: 0>} : vector<8x8xi32>
    %25 = tpu.iota {dimensions = array<i32: 1>} : vector<8x8xi32>
    %c8_i32 = arith.constant 8 : i32
    %26 = arith.muli %arg0, %c8_i32 : i32
    %27 = vector.broadcast %26 : i32 to vector<8x8xi32>
    %28 = arith.addi %27, %24 : vector<8x8xi32>
    %c8_i32_11 = arith.constant 8 : i32
    %29 = vector.broadcast %c8_i32_11 : i32 to vector<8x8xi32>
    %30 = arith.muli %28, %29 : vector<8x8xi32>
    %31 = arith.addi %30, %25 : vector<8x8xi32>
    %c2_i32 = arith.constant 2 : i32
    %32 = vector.broadcast %c2_i32 : i32 to vector<8x8xi32>
    %33 = arith.cmpi slt, %31, %32 : vector<8x8xi32>
    %cst_12 = arith.constant 0.000000e+00 : f32
    %34 = vector.broadcast %cst_12 : f32 to vector<8x8xf32>
    %35 = arith.select %33, %23, %34 : vector<8x8xi1>, vector<8x8xf32>
    %cst_13 = arith.constant dense<0.000000e+00> : vector<8xf32>
    %36 = vector.multi_reduction <add>, %35, %cst_13 [1] : vector<8x8xf32> to vector<8xf32>
    %37 = vector.shape_cast %36 : vector<8xf32> to vector<8x1xf32>
    %cst_14 = arith.constant dense<0.000000e+00> : vector<1xf32>
    %38 = vector.multi_reduction <add>, %37, %cst_14 [0] : vector<8x1xf32> to vector<1xf32>
    %39 = vector.shape_cast %38 : vector<1xf32> to vector<1x1xf32>
    %40 = vector.shape_cast %39 : vector<1x1xf32> to vector<1x1xf32>
    %41 = vector.broadcast %40 : vector<1x1xf32> to vector<8x128xf32>
    %c0_15 = arith.constant 0 : index
    %c0_16 = arith.constant 0 : index
    %42 = vector.load %arg4[%c0_15, %c0_16] : memref<8x128xf32, #tpu.memory_space<vmem>>, vector<8x128xf32>
    tpu.vector_store %arg4[%c0_15, %c0_16], %41 {strides = array<i32>} : memref<8x128xf32, #tpu.memory_space<vmem>>, vector<8x128xf32>,
    return
  }
  func.func @transform_0(%arg0: i32) -> (i32, i32) {
    %c0_i32 = arith.constant 0 : i32
    %c0_i32_0 = arith.constant 0 : i32
    return %arg0, %c0_i32 : i32, i32
  }
  func.func @transform_1(%arg0: i32) -> (i32, i32) {
    %c0_i32 = arith.constant 0 : i32
    %c0_i32_0 = arith.constant 0 : i32
    return %arg0, %c0_i32 : i32, i32
  }
  func.func @transform_2(%arg0: i32) -> (i32, i32) {
    %c0_i32 = arith.constant 0 : i32
    %c0_i32_0 = arith.constant 0 : i32
    %c0_i32_1 = arith.constant 0 : i32
    return %c0_i32, %c0_i32_0 : i32, i32
  }
  func.func @transform_3(%arg0: i32) -> (i32, i32) {
    %c0_i32 = arith.constant 0 : i32
    %c0_i32_0 = arith.constant 0 : i32
    return %arg0, %c0_i32 : i32, i32
  }
}

</mosaic_0001>

<llo_original>
// kernel: tpu_custom_call.1
$region0: #{tpu_custom_call.1}
  #allocation0 [shape = 'u32[]', space=smem, size = 0x4, offset = 0x4, fixed_abs, tag = 'smem constant byte address 0x4 - core index']
  #allocation1 [shape = 'u32[144,128]{1,0:T(1,128)}', space=vmem, size = 0x12000, scoped, tag = 'internal scratch']
  %s0 = inlined_call_operand.vmem [shape: f32[8,128], index: 0, kind: input, shape index: {}]
  %s1 = inlined_call_operand.vmem [shape: f32[8,128], index: 1, kind: input, shape index: {}]
  %s2 = inlined_call_operand.vmem [shape: f32[128,8], index: 2, kind: input, shape index: {}]
  %s3 = inlined_call_operand.hbm [shape: f32[8,128], index: 3, kind: output, shape index: {}]
  %s4 = sld [smem:[#allocation0]]
  $region22: #{tpu_custom_call.1} parent=0
    _
  %s6 = ssub.s32 1, %s4
  %s7 = scalar_select 0, %s6, %s4
  $region1: #{tpu_custom_call.1} parent=0
    #allocation2 [shape = 'u8[4096]{0}', space=vmem, size = 0x1000, scoped, tag = 'output window, operand 0, single buffered']
    #allocation3 [shape = 's32[1]{0}', space=sflag, size = 0x4, scoped, tag = 'scoped memory for tpu_custom_call.1']
    %8 = vsyncpa [#allocation3], 0
    // Predicated region
    $region2: #{tpu_custom_call.1} parent=1 // pred_check
      _
    $region3: #{tpu_custom_call.1} parent=1 // pred_check_branch
      %10 = sbr.rel (0) target = $region5
    $region4: #{tpu_custom_call.1} parent=1 // pred_region
      _
    $region5: #{tpu_custom_call.1} parent=1 // pred_fallthru
      _
    // Predicated region
    $region6: #{tpu_custom_call.1} parent=1 // pred_check
      _
    $region7: #{tpu_custom_call.1} parent=1 // pred_check_branch
      %12 = sbr.rel (0) target = $region9
    $region8: #{tpu_custom_call.1} parent=1 // pred_region
      _
    $region9: #{tpu_custom_call.1} parent=1 // pred_fallthru
      _
    // Predicated region
    $region10: #{tpu_custom_call.1} parent=1 // pred_check
      _
    $region11: #{tpu_custom_call.1} parent=1 // pred_check_branch
      %14 = sbr.rel (0) target = $region13
    $region12: #{tpu_custom_call.1} parent=1 // pred_region
      _
    $region13: #{tpu_custom_call.1} parent=1 // pred_fallthru
      _
    %v15 = vld [vmem:[%s0] sm:$0xff]
    %v16 = vmul.f32 %v15, 0.5
    %v17 = vld [vmem:[%s1] sm:$0xff]
    %v18 = vmul.f32 %v17, 0.5
    %v19 = vld [vmem:[%s2] sm:$0xff]
    %v20 = vld [vmem:[%s2 + $0x8] sm:$0xff]
    %v21 = vld [vmem:[%s2 + $0x10] sm:$0xff]
    %v22 = vld [vmem:[%s2 + $0x18] sm:$0xff]
    %v23 = vld [vmem:[%s2 + $0x20] sm:$0xff]
    %v24 = vld [vmem:[%s2 + $0x28] sm:$0xff]
    %v25 = vld [vmem:[%s2 + $0x30] sm:$0xff]
    %v26 = vld [vmem:[%s2 + $0x38] sm:$0xff]
    %v27 = vld [vmem:[%s2 + $0x40] sm:$0xff]
    %v28 = vld [vmem:[%s2 + $0x48] sm:$0xff]
    %v29 = vld [vmem:[%s2 + $0x50] sm:$0xff]
    %v30 = vld [vmem:[%s2 + $0x58] sm:$0xff]
    %v31 = vld [vmem:[%s2 + $0x60] sm:$0xff]
    %v32 = vld [vmem:[%s2 + $0x68] sm:$0xff]
    %v33 = vld [vmem:[%s2 + $0x70] sm:$0xff]
    %v34 = vld [vmem:[%s2 + $0x78] sm:$0xff]
    %35 = vmax.xlane.f32.xlu0 %v16
    %v36 = vpop.xlane.xlu0 %35
    %37 = vmax.xlane.f32.xlu0 %v18
    %v38 = vpop.xlane.xlu0 %37
    %v39 = vsub.f32 %v16, %v36
    %v40 = vmul.f32 %v39, 1.442695
    %v41 = vpow.pop %v40
    %v42 = vsub.f32 %v18, %v38
    %v43 = vmul.f32 %v42, 1.442695
    %v44 = vpow.pop %v43
    %45 = vmatprep.subr.mxu0 0.0
    %46 = vmatpush1.msra.mxu0 %v19
    %47 = vmatprep.subr.mxu0 0.0
    %48 = vmatpush1.msra.mxu0 %v20
    %49 = vmatprep.subr.mxu0 0.0
    %50 = vmatpush1.msra.mxu0 %v21
    %51 = vmatprep.subr.mxu0 0.0
    %52 = vmatpush1.msra.mxu0 %v22
    %53 = vmatprep.subr.mxu0 0.0
    %54 = vmatpush1.msra.mxu0 %v23
    %55 = vmatprep.subr.mxu0 0.0
    %56 = vmatpush1.msra.mxu0 %v24
    %57 = vmatprep.subr.mxu0 0.0
    %58 = vmatpush1.msra.mxu0 %v25
    %59 = vmatprep.subr.mxu0 0.0
    %60 = vmatpush1.msra.mxu0 %v26
    %61 = vmatprep.subr.mxu0 0.0
    %62 = vmatpush1.msra.mxu0 %v27
    %63 = vmatprep.subr.mxu0 0.0
    %64 = vmatpush1.msra.mxu0 %v28
    %65 = vmatprep.subr.mxu0 0.0
    %66 = vmatpush1.msra.mxu0 %v29
    %67 = vmatprep.subr.mxu0 0.0
    %68 = vmatpush1.msra.mxu0 %v30
    %69 = vmatprep.subr.mxu0 0.0
    %70 = vmatpush1.msra.mxu0 %v31
    %71 = vmatprep.subr.mxu0 0.0
    %72 = vmatpush1.msra.mxu0 %v32
    %73 = vmatprep.subr.mxu0 0.0
    %74 = vmatpush1.msra.mxu0 %v33
    %75 = vmatprep.subr.mxu0 0.0
    %76 = vmatpush1.msra.mxu0 %v34
    %77 = vmatprep.subr.mxu0 0.0
    %78 = vmatpush1.msra.mxu0 0.0
    %79 = vmatprep.subr.mxu0 0.0
    %80 = vmatpush1.msra.mxu0 0.0
    %81 = vmatprep.subr.mxu0 0.0
    %82 = vmatpush1.msra.mxu0 0.0
    %83 = vmatprep.subr.mxu0 0.0
    %84 = vmatpush1.msra.mxu0 0.0
    %85 = vmatprep.subr.mxu0 0.0
    %86 = vmatpush1.msra.mxu0 0.0
    %87 = vmatprep.subr.mxu0 0.0
    %88 = vmatpush1.msra.mxu0 0.0
    %89 = vmatprep.subr.mxu0 0.0
    %90 = vmatpush1.msra.mxu0 0.0
    %91 = vmatprep.subr.mxu0 0.0
    %92 = vmatpush1.msra.mxu0 0.0
    %93 = vmatprep.subr.mxu0 0.0
    %94 = vmatpush1.msra.mxu0 0.0
    %95 = vmatprep.subr.mxu0 0.0
    %96 = vmatpush1.msra.mxu0 0.0
    %97 = vmatprep.subr.mxu0 0.0
    %98 = vmatpush1.msra.mxu0 0.0
    %99 = vmatprep.subr.mxu0 0.0
    %100 = vmatpush1.msra.mxu0 0.0
    %101 = vmatprep.subr.mxu0 0.0
    %102 = vmatpush1.msra.mxu0 0.0
    %103 = vmatprep.subr.mxu0 0.0
    %104 = vmatpush1.msra.mxu0 0.0
    %105 = vmatprep.subr.mxu0 0.0
    %106 = vmatpush1.msra.mxu0 0.0
    %107 = vmatprep.subr.mxu0 0.0
    %108 = vmatpush1.msra.mxu0 0.0
    %109 = vmatprep.mubr.f32.mxu0 0.0
    %110 = vmatmul.mubr.f32.gmra.mrb[0].mxu0 %v41
    %v111 = vpop.f32.mrb[0].mxu0
    %v112 = vadd.f32 0.0, %v111
    %v113 = vpop.f32.mrb[0].mxu0
    %114 = vdwg.mxu0
    %115 = vmatprep.subr.mxu0 0.0
    %116 = vmatpush1.msra.mxu0 %v19
    %117 = vmatprep.subr.mxu0 0.0
    %118 = vmatpush1.msra.mxu0 %v20
    %119 = vmatprep.subr.mxu0 0.0
    %120 = vmatpush1.msra.mxu0 %v21
    %121 = vmatprep.subr.mxu0 0.0
    %122 = vmatpush1.msra.mxu0 %v22
    %123 = vmatprep.subr.mxu0 0.0
    %124 = vmatpush1.msra.mxu0 %v23
    %125 = vmatprep.subr.mxu0 0.0
    %126 = vmatpush1.msra.mxu0 %v24
    %127 = vmatprep.subr.mxu0 0.0
    %128 = vmatpush1.msra.mxu0 %v25
    %129 = vmatprep.subr.mxu0 0.0
    %130 = vmatpush1.msra.mxu0 %v26
    %131 = vmatprep.subr.mxu0 0.0
    %132 = vmatpush1.msra.mxu0 %v27
    %133 = vmatprep.subr.mxu0 0.0
    %134 = vmatpush1.msra.mxu0 %v28
    %135 = vmatprep.subr.mxu0 0.0
    %136 = vmatpush1.msra.mxu0 %v29
    %137 = vmatprep.subr.mxu0 0.0
    %138 = vmatpush1.msra.mxu0 %v30
    %139 = vmatprep.subr.mxu0 0.0
    %140 = vmatpush1.msra.mxu0 %v31
    %141 = vmatprep.subr.mxu0 0.0
    %142 = vmatpush1.msra.mxu0 %v32
    %143 = vmatprep.subr.mxu0 0.0
    %144 = vmatpush1.msra.mxu0 %v33
    %145 = vmatprep.subr.mxu0 0.0
    %146 = vmatpush1.msra.mxu0 %v34
    %147 = vmatprep.subr.mxu0 0.0
    %148 = vmatpush1.msra.mxu0 0.0
    %149 = vmatprep.subr.mxu0 0.0
    %150 = vmatpush1.msra.mxu0 0.0
    %151 = vmatprep.subr.mxu0 0.0
    %152 = vmatpush1.msra.mxu0 0.0
    %153 = vmatprep.subr.mxu0 0.0
    %154 = vmatpush1.msra.mxu0 0.0
    %155 = vmatprep.subr.mxu0 0.0
    %156 = vmatpush1.msra.mxu0 0.0
    %157 = vmatprep.subr.mxu0 0.0
    %158 = vmatpush1.msra.mxu0 0.0
    %159 = vmatprep.subr.mxu0 0.0
    %160 = vmatpush1.msra.mxu0 0.0
    %161 = vmatprep.subr.mxu0 0.0
    %162 = vmatpush1.msra.mxu0 0.0
    %163 = vmatprep.subr.mxu0 0.0
    %164 = vmatpush1.msra.mxu0 0.0
    %165 = vmatprep.subr.mxu0 0.0
    %166 = vmatpush1.msra.mxu0 0.0
    %167 = vmatprep.subr.mxu0 0.0
    %168 = vmatpush1.msra.mxu0 0.0
    %169 = vmatprep.subr.mxu0 0.0
    %170 = vmatpush1.msra.mxu0 0.0
    %171 = vmatprep.subr.mxu0 0.0
    %172 = vmatpush1.msra.mxu0 0.0
    %173 = vmatprep.subr.mxu0 0.0
    %174 = vmatpush1.msra.mxu0 0.0
    %175 = vmatprep.subr.mxu0 0.0
    %176 = vmatpush1.msra.mxu0 0.0
    %177 = vmatprep.subr.mxu0 0.0
    %178 = vmatpush1.msra.mxu0 0.0
    %179 = vmatprep.mubr.f32.mxu0 0.0
    %180 = vmatmul.mubr.f32.gmra.mrb[0].mxu0 %v44
    %v181 = vpop.f32.mrb[0].mxu0
    %v182 = vadd.f32 0.0, %v181
    %v183 = vpop.f32.mrb[0].mxu0
    %184 = vdwg.mxu0
    %v185 = vmul.f32 %v41, %v42
    %186 = vmatprep.subr.mxu0 0.0
    %187 = vmatpush1.msra.mxu0 %v19
    %188 = vmatprep.subr.mxu0 0.0
    %189 = vmatpush1.msra.mxu0 %v20
    %190 = vmatprep.subr.mxu0 0.0
    %191 = vmatpush1.msra.mxu0 %v21
    %192 = vmatprep.subr.mxu0 0.0
    %193 = vmatpush1.msra.mxu0 %v22
    %194 = vmatprep.subr.mxu0 0.0
    %195 = vmatpush1.msra.mxu0 %v23
    %196 = vmatprep.subr.mxu0 0.0
    %197 = vmatpush1.msra.mxu0 %v24
    %198 = vmatprep.subr.mxu0 0.0
    %199 = vmatpush1.msra.mxu0 %v25
    %200 = vmatprep.subr.mxu0 0.0
    %201 = vmatpush1.msra.mxu0 %v26
    %202 = vmatprep.subr.mxu0 0.0
    %203 = vmatpush1.msra.mxu0 %v27
    %204 = vmatprep.subr.mxu0 0.0
    %205 = vmatpush1.msra.mxu0 %v28
    %206 = vmatprep.subr.mxu0 0.0
    %207 = vmatpush1.msra.mxu0 %v29
    %208 = vmatprep.subr.mxu0 0.0
    %209 = vmatpush1.msra.mxu0 %v30
    %210 = vmatprep.subr.mxu0 0.0
    %211 = vmatpush1.msra.mxu0 %v31
    %212 = vmatprep.subr.mxu0 0.0
    %213 = vmatpush1.msra.mxu0 %v32
    %214 = vmatprep.subr.mxu0 0.0
    %215 = vmatpush1.msra.mxu0 %v33
    %216 = vmatprep.subr.mxu0 0.0
    %217 = vmatpush1.msra.mxu0 %v34
    %218 = vmatprep.subr.mxu0 0.0
    %219 = vmatpush1.msra.mxu0 0.0
    %220 = vmatprep.subr.mxu0 0.0
    %221 = vmatpush1.msra.mxu0 0.0
    %222 = vmatprep.subr.mxu0 0.0
    %223 = vmatpush1.msra.mxu0 0.0
    %224 = vmatprep.subr.mxu0 0.0
    %225 = vmatpush1.msra.mxu0 0.0
    %226 = vmatprep.subr.mxu0 0.0
    %227 = vmatpush1.msra.mxu0 0.0
    %228 = vmatprep.subr.mxu0 0.0
    %229 = vmatpush1.msra.mxu0 0.0
    %230 = vmatprep.subr.mxu0 0.0
    %231 = vmatpush1.msra.mxu0 0.0
    %232 = vmatprep.subr.mxu0 0.0
    %233 = vmatpush1.msra.mxu0 0.0
    %234 = vmatprep.subr.mxu0 0.0
    %235 = vmatpush1.msra.mxu0 0.0
    %236 = vmatprep.subr.mxu0 0.0
    %237 = vmatpush1.msra.mxu0 0.0
    %238 = vmatprep.subr.mxu0 0.0
    %239 = vmatpush1.msra.mxu0 0.0
    %240 = vmatprep.subr.mxu0 0.0
    %241 = vmatpush1.msra.mxu0 0.0
    %242 = vmatprep.subr.mxu0 0.0
    %243 = vmatpush1.msra.mxu0 0.0
    %244 = vmatprep.subr.mxu0 0.0
    %245 = vmatpush1.msra.mxu0 0.0
    %246 = vmatprep.subr.mxu0 0.0
    %247 = vmatpush1.msra.mxu0 0.0
    %248 = vmatprep.subr.mxu0 0.0
    %249 = vmatpush1.msra.mxu0 0.0
    %250 = vmatprep.mubr.f32.mxu0 0.0
    %251 = vmatmul.mubr.f32.gmra.mrb[0].mxu0 %v185
    %v252 = vpop.f32.mrb[0].mxu0
    %v253 = vadd.f32 0.0, %v252
    %v254 = vpop.f32.mrb[0].mxu0
    %255 = vdwg.mxu0
    %v256 = vlog2.pop %v182
    %v257 = vmul.f32 %v256, 0.6931472
    %v258 = vrcp.pop %v112
    %v259 = vmul.f32 %v253, %v258
    %v260 = vsub.f32 %v257, %v259
    %v261 = vlaneseq
    %v262 = vshrl.u32 %v261, 7
    %v263 = vlaneseq
    %v264 = vand.u32 %v263, 127
    %s265 = smul.u32 0, 8
    %v266 = vstv %s265
    %v267 = vadd.s32 %v266, %v262
    %v268 = vmul.u32 %v267, 8
    %v269 = vadd.s32 %v268, %v264
    %vm270 = vcmp.lt.s32.totalorder %v269, 2
    %v271 = vsel %vm270, %v260, 0.0
    %vm272 = vcmask 64512
    %v273 = vsel %vm272, %v271, 0.0
    %274 = vadd.xlane.f32.xlu0 %v273
    %v275 = vpop.xlane.xlu0 %274
    %v276 = vrot.slane %v275, 4
    %v277 = vadd.f32 %v275, %v276
    %v278 = vrot.slane %v277, 2
    %v279 = vadd.f32 %v277, %v278
    %v280 = vrot.slane %v279, 1
    %v281 = vadd.f32 %v279, %v280
    %282 = vst [vmem:[#allocation2] sm:$0xff] %v281
    // Predicated region
    $region14: #{tpu_custom_call.1} parent=1 // pred_check
      _
    $region15: #{tpu_custom_call.1} parent=1 // pred_check_branch
      %284 = sbr.rel (0) target = $region17
    $region16: #{tpu_custom_call.1} parent=1 // pred_region
      %s286 = ssub.s32 128, 128
      %287 = vsyncadd [#allocation3], %s286
      %s289 = sshll.u32 [#allocation2], 4
      %s290 = int_to_ptr.vmem [resolvable:$true] %s289
      %292 = dma.vmem_to_hbm [thread:$0]  %s290, 128, %s3, [#allocation3]
    $region17: #{tpu_custom_call.1} parent=1 // pred_fallthru
      _
    // Predicated region
    $region18: #{tpu_custom_call.1} parent=1 // pred_check
      _
    $region19: #{tpu_custom_call.1} parent=1 // pred_check_branch
      %294 = sbr.rel (0) target = $region21
    $region20: #{tpu_custom_call.1} parent=1 // pred_region
      %295 = dma.done [#allocation3], 128
    $region21: #{tpu_custom_call.1} parent=1 // pred_fallthru
      _
    %296 = vsyncpa [#allocation3], 1

</llo_original>
